<compile_context>
chip_gen: v7x
topology: tpu7x:2x2x1
jax: 0.10.0
libtpu: 0.0.40
codegen_flags: <defaults>
</compile_context>

<pallas_src>
import functools

import jax
import jax.numpy as jnp
from jax.experimental import pallas as pl
from jax.experimental.pallas import tpu as pltpu


def _basicblock_kernel(x_ref, bands_ref, sb_ref, o_ref, mid_ref, *,
                       nb_images, img_h, frame_h, wc, mm_dtype):
    """One grid step: nb_images images, each framed into frame_h rows.

    x_ref     : (nb_images*frame_h, W*C) f32 row-packed input; per-image frame =
                [zero pad row, img_h image rows, zero pad row, zero filler rows]
    bands_ref : (2, W*C, 3*W*C)  concatenated block-banded conv weights (conv1, conv2)
    sb_ref    : (4, W*C)         folded BN params [scale1, bias1, scale2, bias2]
    o_ref     : (nb_images*img_h, W*C) f32 lane-dense output
    mid_ref   : (nb_images*frame_h, W*C) scratch holding the zero-padded conv2 input
    """
    H, Hp, WC = img_h, frame_h, wc
    M = nb_images * Hp

    x_f32 = x_ref[...]                           # (M, WC) f32 (residual stays exact)
    x_mm = x_f32.astype(mm_dtype)                # cast only for the MXU operands

    sb = sb_ref[...]                             # (4, WC) f32
    s1, b1 = sb[0:1, :], sb[1:2, :]
    s2, b2 = sb[2:3, :], sb[3:4, :]

    # ---- conv1: single fused MXU matmul against the concatenated band matrix ----
    r1 = jnp.dot(x_mm, bands_ref[0], preferred_element_type=jnp.float32)  # (M, 3*WC)
    # conv output at frame row j+1 = r1[j, kh0] + r1[j+1, kh1] + r1[j+2, kh2]
    acc1 = (r1[0:M - 2, 0:WC]
            + r1[1:M - 1, WC:2 * WC]
            + r1[2:M, 2 * WC:3 * WC])            # (M-2, WC)
    out1 = jnp.maximum(acc1 * s1 + b1, 0.0)      # BN1 (folded) + ReLU, f32

    # ---- conv2 input: zero-padded frames rebuilt in a VMEM scratch (no concat) ----
    mid_ref[...] = jnp.zeros_like(mid_ref)       # pad + filler rows -> 0
    for nb in range(nb_images):
        base = nb * Hp
        # valid image rows of this frame live at out1 rows [base, base+H)
        mid_ref[pl.ds(base + 1, H), :] = out1[base:base + H].astype(mm_dtype)

    # ---- conv2: second fused MXU matmul ----
    r2 = jnp.dot(mid_ref[...], bands_ref[1], preferred_element_type=jnp.float32)
    acc2 = (r2[0:M - 2, 0:WC]
            + r2[1:M - 1, WC:2 * WC]
            + r2[2:M, 2 * WC:3 * WC])
    out2 = acc2 * s2 + b2                        # BN2 (folded), f32

    # ---- identity shortcut (exact f32) + final ReLU, lane-dense stores ----
    for nb in range(nb_images):
        base = nb * Hp
        res = x_f32[base + 1:base + 1 + H, :]                  # valid rows, f32
        y = jnp.maximum(out2[base:base + H] + res, 0.0)
        o_ref[pl.ds(nb * H, H), :] = y.astype(o_ref.dtype)


def make_basicblock_params(w1, bn1, w2, bn2, width, eps=1e-5,
                           matmul_dtype=jnp.bfloat16):
    """Precompute (once per model) the banded conv weights and folded BN params.

    w*  : (C, C, 3, 3) conv weights (OIHW);  bn* : (gamma, beta, mean, var)
    matmul_dtype: bf16 by default on all TPU generations (the MXU is bf16-native,
    including v5e); accumulation and elementwise math stay f32 in the kernel.
    """
    C = w1.shape[0]
    W = width
    WC = W * C

    def band_cat(w):
        # (Cout, Cin, 3, 3) -> (W*C, 3*W*C): one block-banded matrix per kh tap
        # row (kw taps and width zero-padding baked in), concatenated along the
        # output axis so the kernel does a single wide matmul per conv.
        bands = []
        for kh in range(3):
            acc = jnp.zeros((WC, WC), jnp.float32)
            for kw in range(3):
                shift = jnp.eye(W, W, k=1 - kw, dtype=jnp.float32)
                tap = w[:, :, kh, kw].T                       # (Cin, Cout)
                acc = acc + jnp.kron(shift, tap)
            bands.append(acc)
        return jnp.concatenate(bands, axis=1)                 # (WC, 3*WC)

    def fold_bn(params):
        gamma, beta, mean, var = params
        scale = gamma / jnp.sqrt(var + eps)
        bias = beta - mean * scale
        return jnp.tile(scale, W), jnp.tile(bias, W)          # lane-dense (WC,)

    bands = jnp.stack([band_cat(w1), band_cat(w2)]).astype(matmul_dtype)
    s1, b1 = fold_bn(bn1)
    s2, b2 = fold_bn(bn2)
    scale_bias = jnp.stack([s1, b1, s2, b2]).astype(jnp.float32)   # (4, WC)

    return dict(bands=bands, scale_bias=scale_bias, width=W, channels=C,
                matmul_dtype=matmul_dtype)


def basicblock_forward_packed(x_packed, params, images_per_block=None):
    """Forward on row-packed activations: x_packed (N, H, W*C) f32 -> (N, H, W*C).

    Chained BasicBlocks should stay in this layout to avoid per-block transposes.
    """
    N, H, WC = x_packed.shape
    assert WC == params["width"] * params["channels"]
    mm_dtype = params["matmul_dtype"]

    if images_per_block is None:
        # Batch images per step to enlarge matmul M, but keep grid >= 2 when the
        # batch allows so both v7x TensorCores get work (harmless on v5e/v6e).
        images_per_block = N // 2 if (N >= 2 and N % 2 == 0) else 1
    NB = images_per_block
    assert N % NB == 0
    num_blocks = N // NB

    Hp = ((H + 2 + 7) // 8) * 8        # frame rows: conv pads + 8-sublane alignment
    M = NB * Hp

    # Frame each image: [1 zero pad row, H image rows, (Hp-H-1) zero rows]; flat 2D.
    x_framed = jnp.pad(x_packed.astype(jnp.float32),
                       ((0, 0), (1, Hp - H - 1), (0, 0)))      # (N, Hp, WC)
    x_rows = x_framed.reshape(N * Hp, WC)

    kernel = functools.partial(_basicblock_kernel, nb_images=NB, img_h=H,
                               frame_h=Hp, wc=WC, mm_dtype=mm_dtype)

    out_rows = pl.pallas_call(
        kernel,
        out_shape=jax.ShapeDtypeStruct((N * H, WC), jnp.float32),
        grid_spec=pltpu.PrefetchScalarGridSpec(
            num_scalar_prefetch=0,
            grid=(num_blocks,),
            in_specs=[
                pl.BlockSpec((M, WC), lambda i: (i, 0)),            # activations
                pl.BlockSpec((2, WC, 3 * WC), lambda i: (0, 0, 0)),  # conv bands
                pl.BlockSpec((4, WC), lambda i: (0, 0)),             # BN scale/bias
            ],
            out_specs=pl.BlockSpec((NB * H, WC), lambda i: (i, 0)),
            scratch_shapes=[pltpu.VMEM((M, WC), mm_dtype)],          # conv2 pad frame
        ),
        compiler_params=pltpu.CompilerParams(
            dimension_semantics=("parallel",)),
    )(x_rows, params["bands"], params["scale_bias"])

    return out_rows.reshape(N, H, WC)


def basicblock_forward(x_nchw, params, images_per_block=None):
    """NCHW boundary wrapper (layout conversion only at the model boundary)."""
    N, C, H, W = x_nchw.shape
    x_packed = jnp.transpose(x_nchw, (0, 2, 3, 1)).reshape(N, H, W * C)
    out_packed = basicblock_forward_packed(x_packed, params, images_per_block)
    return jnp.transpose(out_packed.reshape(N, H, W, C), (0, 3, 1, 2))


def reference_forward(x, w1, bn1, w2, bn2, eps=1e-5):
    def conv(a, w):
        return jax.lax.conv_general_dilated(
            a, w, (1, 1), ((1, 1), (1, 1)),
            dimension_numbers=("NCHW", "OIHW", "NCHW"))

    def bn(a, p):
        g, b, m, v = p
        inv = g / jnp.sqrt(v + eps)
        return (a - m[None, :, None, None]) * inv[None, :, None, None] \
            + b[None, :, None, None]

    out = jax.nn.relu(bn(conv(x, w1), bn1))
    out = bn(conv(out, w2), bn2)
    return jax.nn.relu(out + x)


if __name__ == "__main__":
    N, C, H, W = 2, 8, 16, 16            # in_planes == planes, stride == 1
    key = jax.random.PRNGKey(0)
    kx, k1, k2, kb = jax.random.split(key, 4)

    x = jax.random.normal(kx, (N, C, H, W), jnp.float32)
    w1 = jax.random.normal(k1, (C, C, 3, 3), jnp.float32) * 0.1
    w2 = jax.random.normal(k2, (C, C, 3, 3), jnp.float32) * 0.1

    kb1, kb2, kb3, kb4 = jax.random.split(kb, 4)
    bn1 = (1.0 + 0.1 * jax.random.normal(kb1, (C,), jnp.float32),     # gamma
           0.1 * jax.random.normal(kb2, (C,), jnp.float32),           # beta
           0.05 * jax.random.normal(kb3, (C,), jnp.float32),          # running mean
           0.5 + jnp.abs(jax.random.normal(kb4, (C,), jnp.float32)))  # running var
    bn2 = (1.0 - 0.05 * jax.random.normal(kb2, (C,), jnp.float32),
           0.05 * jax.random.normal(kb3, (C,), jnp.float32),
           0.02 * jax.random.normal(kb4, (C,), jnp.float32),
           0.5 + jnp.abs(jax.random.normal(kb1, (C,), jnp.float32)))

    ref = reference_forward(x, w1, bn1, w2, bn2)

    # Exact f32 MXU path (matches the PyTorch module's f32 semantics).
    params_f32 = make_basicblock_params(w1, bn1, w2, bn2, width=W,
                                        matmul_dtype=jnp.float32)
    out_f32 = jax.block_until_ready(basicblock_forward(x, params_f32))
    assert out_f32.shape == (N, C, H, W)
    assert jnp.allclose(out_f32, ref, atol=1e-4, rtol=1e-4), \
        f"f32 max err {jnp.max(jnp.abs(out_f32 - ref))}"

    # Default: bf16 MXU operands (fast on v5e/v6e/v7x); f32 accumulation, exact
    # f32 residual (x is never quantized in HBM).
    params_def = make_basicblock_params(w1, bn1, w2, bn2, width=W)
    out_def = jax.block_until_ready(basicblock_forward(x, params_def))
    assert jnp.allclose(out_def, ref, atol=5e-2, rtol=5e-2), \
        f"bf16 max err {jnp.max(jnp.abs(out_def - ref))}"

    print("KERNEL_OK")
</pallas_src>

<mosaic_0001>
module attributes {stable_mosaic.version = 11 : i64} {
  func.func @_basicblock_kernel(%arg0: i32, %arg1: memref<24x128xf32, #tpu.memory_space<vmem>>, %arg2: memref<2x128x384xf32, #tpu.memory_space<vmem>>, %arg3: memref<4x128xf32, #tpu.memory_space<vmem>>, %arg4: memref<16x128xf32, #tpu.memory_space<vmem>>, %arg5: memref<24x128xf32, #tpu.memory_space<vmem>>) attributes {dimension_semantics = [#tpu.dimension_semantics<parallel>], iteration_bounds = array<i64: 2>, scalar_prefetch = 0 : i64, scratch_operands = 1 : i64, tpu.core_type = #tpu.core_type<tc>, window_params = [{transform_indices = @transform_0, window_bounds = array<i64: 24, 128>}, {pipeline_mode = #tpu.pipeline_mode<synchronous>, transform_indices = @transform_1, window_bounds = array<i64: 2, 128, 384>}, {pipeline_mode = #tpu.pipeline_mode<synchronous>, transform_indices = @transform_2, window_bounds = array<i64: 4, 128>}, {transform_indices = @transform_3, window_bounds = array<i64: 16, 128>}]} {
    %c0 = arith.constant 0 : index
    %c0_0 = arith.constant 0 : index
    %0 = vector.load %arg1[%c0, %c0_0] : memref<24x128xf32, #tpu.memory_space<vmem>>, vector<24x128xf32>
    %c0_1 = arith.constant 0 : index
    %c0_2 = arith.constant 0 : index
    %1 = vector.load %arg3[%c0_1, %c0_2] : memref<4x128xf32, #tpu.memory_space<vmem>>, vector<4x128xf32>
    %2 = vector.extract_strided_slice %1 {offsets = [0, 0], sizes = [1, 128], strides = [1, 1]} : vector<4x128xf32> to vector<1x128xf32>
    %3 = vector.extract_strided_slice %1 {offsets = [1, 0], sizes = [1, 128], strides = [1, 1]} : vector<4x128xf32> to vector<1x128xf32>
    %4 = vector.extract_strided_slice %1 {offsets = [2, 0], sizes = [1, 128], strides = [1, 1]} : vector<4x128xf32> to vector<1x128xf32>
    %5 = vector.extract_strided_slice %1 {offsets = [3, 0], sizes = [1, 128], strides = [1, 1]} : vector<4x128xf32> to vector<1x128xf32>
    %c0_3 = arith.constant 0 : index
    %c0_4 = arith.constant 0 : index
    %c0_5 = arith.constant 0 : index
    %6 = vector.load %arg2[%c0_3, %c0_4, %c0_5] : memref<2x128x384xf32, #tpu.memory_space<vmem>>, vector<1x128x384xf32>
    %7 = vector.shape_cast %6 : vector<1x128x384xf32> to vector<128x384xf32>
    %cst = arith.constant dense<0.000000e+00> : vector<24x384xf32>
    %8 = tpu.matmul %0, %7, %cst {dimension_numbers = #tpu.dot_dimension_numbers<[1], [0], [0], [1], [0, 0, 1, 1], [], []>} : vector<24x128xf32>, vector<128x384xf32>, vector<24x384xf32> -> vector<24x384xf32>
    %9 = vector.extract_strided_slice %8 {offsets = [0, 0], sizes = [22, 128], strides = [1, 1]} : vector<24x384xf32> to vector<22x128xf32>
    %10 = vector.extract_strided_slice %8 {offsets = [1, 128], sizes = [22, 128], strides = [1, 1]} : vector<24x384xf32> to vector<22x128xf32>
    %11 = arith.addf %9, %10 : vector<22x128xf32>
    %12 = vector.extract_strided_slice %8 {offsets = [2, 256], sizes = [22, 128], strides = [1, 1]} : vector<24x384xf32> to vector<22x128xf32>
    %13 = arith.addf %11, %12 : vector<22x128xf32>
    %14 = vector.broadcast %2 : vector<1x128xf32> to vector<22x128xf32>
    %15 = arith.mulf %13, %14 : vector<22x128xf32>
    %16 = vector.broadcast %3 : vector<1x128xf32> to vector<22x128xf32>
    %17 = arith.addf %15, %16 : vector<22x128xf32>
    %cst_6 = arith.constant 0.000000e+00 : f32
    %18 = vector.broadcast %cst_6 : f32 to vector<22x128xf32>
    %19 = arith.maximumf %17, %18 : vector<22x128xf32>
    %cst_7 = arith.constant 0.000000e+00 : f32
    %20 = vector.broadcast %cst_7 : f32 to vector<24x128xf32>
    %c0_8 = arith.constant 0 : index
    %c0_9 = arith.constant 0 : index
    %21 = vector.load %arg5[%c0_8, %c0_9] : memref<24x128xf32, #tpu.memory_space<vmem>>, vector<24x128xf32>
    tpu.vector_store %arg5[%c0_8, %c0_9], %20 {strides = array<i32>} : memref<24x128xf32, #tpu.memory_space<vmem>>, vector<24x128xf32>,
    %22 = vector.extract_strided_slice %19 {offsets = [0, 0], sizes = [16, 128], strides = [1, 1]} : vector<22x128xf32> to vector<16x128xf32>
    %c1 = arith.constant 1 : index
    %c0_10 = arith.constant 0 : index
    %23 = vector.load %arg5[%c1, %c0_10] : memref<24x128xf32, #tpu.memory_space<vmem>>, vector<16x128xf32>
    tpu.vector_store %arg5[%c1, %c0_10], %22 {strides = array<i32>} : memref<24x128xf32, #tpu.memory_space<vmem>>, vector<16x128xf32>,
    %c0_11 = arith.constant 0 : index
    %c0_12 = arith.constant 0 : index
    %24 = vector.load %arg5[%c0_11, %c0_12] : memref<24x128xf32, #tpu.memory_space<vmem>>, vector<24x128xf32>
    %c1_13 = arith.constant 1 : index
    %c0_14 = arith.constant 0 : index
    %c0_15 = arith.constant 0 : index
    %25 = vector.load %arg2[%c1_13, %c0_14, %c0_15] : memref<2x128x384xf32, #tpu.memory_space<vmem>>, vector<1x128x384xf32>
    %26 = vector.shape_cast %25 : vector<1x128x384xf32> to vector<128x384xf32>
    %cst_16 = arith.constant dense<0.000000e+00> : vector<24x384xf32>
    %27 = tpu.matmul %24, %26, %cst_16 {dimension_numbers = #tpu.dot_dimension_numbers<[1], [0], [0], [1], [0, 0, 1, 1], [], []>} : vector<24x128xf32>, vector<128x384xf32>, vector<24x384xf32> -> vector<24x384xf32>
    %28 = vector.extract_strided_slice %27 {offsets = [0, 0], sizes = [22, 128], strides = [1, 1]} : vector<24x384xf32> to vector<22x128xf32>
    %29 = vector.extract_strided_slice %27 {offsets = [1, 128], sizes = [22, 128], strides = [1, 1]} : vector<24x384xf32> to vector<22x128xf32>
    %30 = arith.addf %28, %29 : vector<22x128xf32>
    %31 = vector.extract_strided_slice %27 {offsets = [2, 256], sizes = [22, 128], strides = [1, 1]} : vector<24x384xf32> to vector<22x128xf32>
    %32 = arith.addf %30, %31 : vector<22x128xf32>
    %33 = vector.broadcast %4 : vector<1x128xf32> to vector<22x128xf32>
    %34 = arith.mulf %32, %33 : vector<22x128xf32>
    %35 = vector.broadcast %5 : vector<1x128xf32> to vector<22x128xf32>
    %36 = arith.addf %34, %35 : vector<22x128xf32>
    %37 = vector.extract_strided_slice %0 {offsets = [1, 0], sizes = [16, 128], strides = [1, 1]} : vector<24x128xf32> to vector<16x128xf32>
    %38 = vector.extract_strided_slice %36 {offsets = [0, 0], sizes = [16, 128], strides = [1, 1]} : vector<22x128xf32> to vector<16x128xf32>
    %39 = arith.addf %38, %37 : vector<16x128xf32>
    %cst_17 = arith.constant 0.000000e+00 : f32
    %40 = vector.broadcast %cst_17 : f32 to vector<16x128xf32>
    %41 = arith.maximumf %39, %40 : vector<16x128xf32>
    %c0_18 = arith.constant 0 : index
    %c0_19 = arith.constant 0 : index
    %42 = vector.load %arg4[%c0_18, %c0_19] : memref<16x128xf32, #tpu.memory_space<vmem>>, vector<16x128xf32>
    tpu.vector_store %arg4[%c0_18, %c0_19], %41 {strides = array<i32>} : memref<16x128xf32, #tpu.memory_space<vmem>>, vector<16x128xf32>,
    return
  }
  func.func @transform_0(%arg0: i32) -> (i32, i32) {
    %c0_i32 = arith.constant 0 : i32
    %c0_i32_0 = arith.constant 0 : i32
    return %arg0, %c0_i32 : i32, i32
  }
  func.func @transform_1(%arg0: i32) -> (i32, i32, i32) {
    %c0_i32 = arith.constant 0 : i32
    %c0_i32_0 = arith.constant 0 : i32
    %c0_i32_1 = arith.constant 0 : i32
    %c0_i32_2 = arith.constant 0 : i32
    return %c0_i32, %c0_i32_0, %c0_i32_1 : i32, i32, i32
  }
  func.func @transform_2(%arg0: i32) -> (i32, i32) {
    %c0_i32 = arith.constant 0 : i32
    %c0_i32_0 = arith.constant 0 : i32
    %c0_i32_1 = arith.constant 0 : i32
    return %c0_i32, %c0_i32_0 : i32, i32
  }
  func.func @transform_3(%arg0: i32) -> (i32, i32) {
    %c0_i32 = arith.constant 0 : i32
    %c0_i32_0 = arith.constant 0 : i32
    return %arg0, %c0_i32 : i32, i32
  }
}

</mosaic_0001>

<llo_original>
// kernel: tpu_custom_call.1
$region0: #{tpu_custom_call.1}
  #allocation0 [shape = 'u32[]', space=smem, size = 0x4, offset = 0x4, fixed_abs, tag = 'smem constant byte address 0x4 - core index']
  #allocation1 [shape = 'u32[144,128]{1,0:T(1,128)}', space=vmem, size = 0x12000, scoped, tag = 'internal scratch']
  #allocation2 [shape = 'f32[24,128]{1,0:T(8,128)}', space=vmem, size = 0x3000, scoped, tag = 'scratch operand']
  %s0 = inlined_call_operand.hbm [shape: f32[48,128], index: 0, kind: input, shape index: {}]
  %s1 = inlined_call_operand.hbm [shape: f32[2,128,384], index: 1, kind: input, shape index: {}]
  %s2 = inlined_call_operand.vmem [shape: f32[4,128], index: 2, kind: input, shape index: {}]
  %s3 = inlined_call_operand.hbm [shape: f32[32,128], index: 3, kind: output, shape index: {}]
  %s4 = sld [smem:[#allocation0]]
  $region53: #{tpu_custom_call.1} parent=0
    _
  %s6 = ssub.s32 1, %s4
  %s7 = scalar_select 0, %s6, %s4
  $region1: #{tpu_custom_call.1} parent=0
    #allocation3 [shape = 'u8[24576]{0}', space=vmem, size = 0x6000, scoped, tag = 'input window, operand 0']
    #allocation4 [shape = 's32[2]{0}', space=sflag, size = 0x8, scoped, tag = 'scoped memory for tpu_custom_call.1']
    #allocation5 [shape = 's32[2]{0}', space=sflag, size = 0x8, scoped, tag = 'scoped memory for tpu_custom_call.1']
    #allocation6 [shape = 'u8[393216]{0}', space=vmem, size = 0x60000, scoped, tag = 'input window, operand 1, single buffered']
    #allocation7 [shape = 's32[1]{0}', space=sflag, size = 0x4, scoped, tag = 'scoped memory for tpu_custom_call.1']
    #allocation8 [shape = 'u8[16384]{0}', space=vmem, size = 0x4000, scoped, tag = 'output window, operand 0']
    %8 = vsyncpa [#allocation4], 0
    %s9 = scalar_lea.sflag [#allocation4], 1
    %10 = vsyncpa %s9, 0
    %11 = vsyncpa [#allocation7], 0
    %12 = vsyncpa [#allocation5], 0
    %s13 = scalar_lea.sflag [#allocation5], 1
    %14 = vsyncpa %s13, 0
    loop: start=0, step=1, limit=4
    $region2: #{tpu_custom_call.1} parent=1 // loop_pre_header
      _
    $region3: #{tpu_custom_call.1} parent=1 // loop_header
      %s16 = sphi 0, %s20
      %p17 = scmp.ge.s32.totalorder %s16, 4
      %s26 = sphi 0, %s28
      %s29 = sphi 0, %s26
      %s30 = sphi 0, %s29
      %s46 = sphi 0, %s30
      %s50 = sphi 0, %s50
      %s52 = sphi 0, %s50
      %s53 = sphi 0, %s52
      %s67 = sphi 0, %s53
      %s71 = sphi 0, %s71
      %s73 = sphi 0, %s71
      %s74 = sphi 0, %s73
      %s88 = sphi 0, %s74
      %s94 = sphi 0, %s96
      %s97 = sphi 0, %s94
      %s98 = sphi 0, %s97
      %s114 = sphi 0, %s98
    $region4: #{tpu_custom_call.1} parent=1 // loop_header_branch
      %19 = sbr.rel (%p17) target = $region8
    $region5: #{tpu_custom_call.1} parent=1 // loop_body
      %s21 = ssub.s32 %s16, 1
      %s22 = ssub.s32 %s16, 2
      %s23 = sadd.s32 %s16, 1
      %s24 = ssub.s32 %s16, %s23
      %p25 = scmp.eq.s32.totalorder %s24, 0
      %s27 = sadd.s32 %s26, 1
      %s28 = scalar_select %p25, %s26, %s27
      %p31 = pneg %p25
      %p32 = scmp.eq.s32.totalorder %s16, 1
      %p33 = por %p31, %p32
      %p34 = scmp.ne.s32.totalorder %s26, %s29
      %p35 = scmp.eq.s32.totalorder %s16, 0
      %p36 = por %p34, %p35
      %p37 = scmp.ne.s32.totalorder %s26, %s29
      %p38 = scmp.eq.s32.totalorder %s21, 1
      %p39 = por %p37, %p38
      %p40 = scmp.ne.s32.totalorder %s29, %s30
      %p41 = scmp.eq.s32.totalorder %s21, 0
      %p42 = por %p40, %p41
      %p43 = scmp.ne.s32.totalorder %s29, %s30
      %p44 = scmp.eq.s32.totalorder %s22, 1
      %p45 = por %p43, %p44
      %p47 = scmp.ne.s32.totalorder %s30, %s46
      %p48 = scmp.eq.s32.totalorder %s22, 0
      %p49 = por %p47, %p48
      %s51 = sadd.s32 %s50, 1
      %p54 = scmp.eq.s32.totalorder %s16, 1
      %p55 = scmp.ne.s32.totalorder %s50, %s52
      %p56 = scmp.eq.s32.totalorder %s16, 0
      %p57 = por %p55, %p56
      %p58 = scmp.ne.s32.totalorder %s50, %s52
      %p59 = scmp.eq.s32.totalorder %s21, 1
      %p60 = por %p58, %p59
      %p61 = scmp.ne.s32.totalorder %s52, %s53
      %p62 = scmp.eq.s32.totalorder %s21, 0
      %p63 = por %p61, %p62
      %p64 = scmp.ne.s32.totalorder %s52, %s53
      %p65 = scmp.eq.s32.totalorder %s22, 1
      %p66 = por %p64, %p65
      %p68 = scmp.ne.s32.totalorder %s53, %s67
      %p69 = scmp.eq.s32.totalorder %s22, 0
      %p70 = por %p68, %p69
      %s72 = sadd.s32 %s71, 1
      %p75 = scmp.eq.s32.totalorder %s16, 1
      %p76 = scmp.ne.s32.totalorder %s71, %s73
      %p77 = scmp.eq.s32.totalorder %s16, 0
      %p78 = por %p76, %p77
      %p79 = scmp.ne.s32.totalorder %s71, %s73
      %p80 = scmp.eq.s32.totalorder %s21, 1
      %p81 = por %p79, %p80
      %p82 = scmp.ne.s32.totalorder %s73, %s74
      %p83 = scmp.eq.s32.totalorder %s21, 0
      %p84 = por %p82, %p83
      %p85 = scmp.ne.s32.totalorder %s73, %s74
      %p86 = scmp.eq.s32.totalorder %s22, 1
      %p87 = por %p85, %p86
      %p89 = scmp.ne.s32.totalorder %s74, %s88
      %p90 = scmp.eq.s32.totalorder %s22, 0
      %p91 = por %p89, %p90
      %s92 = ssub.s32 %s16, %s23
      %p93 = scmp.eq.s32.totalorder %s92, 0
      %s95 = sadd.s32 %s94, 1
      %s96 = scalar_select %p93, %s94, %s95
      %p99 = pneg %p93
      %p100 = scmp.eq.s32.totalorder %s16, 1
      %p101 = por %p99, %p100
      %p102 = scmp.ne.s32.totalorder %s94, %s97
      %p103 = scmp.eq.s32.totalorder %s16, 0
      %p104 = por %p102, %p103
      %p105 = scmp.ne.s32.totalorder %s94, %s97
      %p106 = scmp.eq.s32.totalorder %s21, 1
      %p107 = por %p105, %p106
      %p108 = scmp.ne.s32.totalorder %s97, %s98
      %p109 = scmp.eq.s32.totalorder %s21, 0
      %p110 = por %p108, %p109
      %p111 = scmp.ne.s32.totalorder %s97, %s98
      %p112 = scmp.eq.s32.totalorder %s22, 1
      %p113 = por %p111, %p112
      %p115 = scmp.ne.s32.totalorder %s98, %s114
      %p116 = scmp.eq.s32.totalorder %s22, 0
      %p117 = por %p115, %p116
      %p118 = scmp.le.s32.totalorder 1, %s16
      %p119 = scmp.lt.s32.totalorder %s16, 3
      %p120 = pnand %p118, %p119
      %p121 = pneg %p120
      // Predicated region
      $region9: #{tpu_custom_call.1} parent=5 // pred_check
        _
      $region10: #{tpu_custom_call.1} parent=5 // pred_check_branch
        %123 = sbr.rel (%p120) target = $region12
      $region11: #{tpu_custom_call.1} parent=5 // pred_region
        %s124 = ssub.s32 %s16, 1
        // Predicated region
        $region13: #{tpu_custom_call.1} parent=11 // pred_check
          %p125 = pneg %p63
        $region14: #{tpu_custom_call.1} parent=11 // pred_check_branch
          %127 = sbr.rel (%p125) target = $region16
        $region15: #{tpu_custom_call.1} parent=11 // pred_region
          %s129 = ssub.s32 12288, 12288
          %130 = vsyncadd [#allocation7], %s129
          %s131 = sshll.u32 [#allocation6], 4
          %s132 = int_to_ptr.vmem [resolvable:$true] %s131
          %137 = dma.hbm_to_vmem [thread:$0]  %s1, 12288, %s132, [#allocation7], 384, 384, 24
        $region16: #{tpu_custom_call.1} parent=11 // pred_fallthru
          _
        // Predicated region
        $region17: #{tpu_custom_call.1} parent=11 // pred_check
          %p138 = pneg %p84
        $region18: #{tpu_custom_call.1} parent=11 // pred_check_branch
          %140 = sbr.rel (%p138) target = $region20
        $region19: #{tpu_custom_call.1} parent=11 // pred_region
          _
        $region20: #{tpu_custom_call.1} parent=11 // pred_fallthru
          _
      $region12: #{tpu_custom_call.1} parent=5 // pred_fallthru
        _
      %p141 = scmp.lt.s32.totalorder %s16, 2
      // Predicated region
      $region21: #{tpu_custom_call.1} parent=5 // pred_check
        %p142 = pneg %p141
      $region22: #{tpu_custom_call.1} parent=5 // pred_check_branch
        %144 = sbr.rel (%p142) target = $region24
      $region23: #{tpu_custom_call.1} parent=5 // pred_region
        // Predicated region
        $region25: #{tpu_custom_call.1} parent=23 // pred_check
          %p145 = pneg %p36
        $region26: #{tpu_custom_call.1} parent=23 // pred_check_branch
          %147 = sbr.rel (%p145) target = $region28
        $region27: #{tpu_custom_call.1} parent=23 // pred_region
          %s148 = sand.u32 %s26, 1
          %s149 = scalar_lea.sflag [#allocation4], %s148
          %s150 = sand.u32 %s26, 1
          %s151 = smul.addr %s150, 24
          %s152 = scalar_lea.vmem [#allocation3], %s151
          %s153 = smul.u32 3, %s16
          %s155 = ssub.s32 384, 384
          %156 = vsyncadd %s149, %s155
          %s157 = smul.addr %s153, 128
          %s158 = scalar_lea.hbm %s0, %s157
          %s159 = sshll.u32 %s152, 4
          %s160 = int_to_ptr.vmem [resolvable:$true] %s159
          %165 = dma.hbm_to_vmem [thread:$0]  %s158, 384, %s160, %s149, 128, 128, 8
        $region28: #{tpu_custom_call.1} parent=23 // pred_fallthru
          _
      $region24: #{tpu_custom_call.1} parent=5 // pred_fallthru
        _
      %p166 = scmp.le.s32.totalorder 1, %s16
      %p167 = scmp.lt.s32.totalorder %s16, 3
      %p168 = pnand %p166, %p167
      %p169 = pneg %p168
      // Predicated region
      $region29: #{tpu_custom_call.1} parent=5 // pred_check
        _
      $region30: #{tpu_custom_call.1} parent=5 // pred_check_branch
        %171 = sbr.rel (%p168) target = $region32
      $region31: #{tpu_custom_call.1} parent=5 // pred_region
        %s172 = ssub.s32 %s16, 1
        %s173 = sand.u32 %s29, 1
        %s174 = scalar_lea.sflag [#allocation4], %s173
        %s175 = sand.u32 %s29, 1
        %s176 = smul.addr %s175, 24
        %s177 = scalar_lea.vmem [#allocation3], %s176
        // Predicated region
        $region33: #{tpu_custom_call.1} parent=31 // pred_check
          %p178 = pneg %p42
        $region34: #{tpu_custom_call.1} parent=31 // pred_check_branch
          %180 = sbr.rel (%p178) target = $region36
        $region35: #{tpu_custom_call.1} parent=31 // pred_region
          %181 = dma.done %s174, 384
        $region36: #{tpu_custom_call.1} parent=31 // pred_fallthru
          _
        // Predicated region
        $region37: #{tpu_custom_call.1} parent=31 // pred_check
          %p182 = pneg %p63
        $region38: #{tpu_custom_call.1} parent=31 // pred_check_branch
          %184 = sbr.rel (%p182) target = $region40
        $region39: #{tpu_custom_call.1} parent=31 // pred_region
          %185 = dma.done [#allocation7], 12288
        $region40: #{tpu_custom_call.1} parent=31 // pred_fallthru
          _
        %s186 = sand.u32 %s29, 1
        %s187 = scalar_lea.sflag [#allocation4], %s186
        %s188 = sand.u32 %s29, 1
        %s189 = smul.addr %s188, 24
        %s190 = scalar_lea.vmem [#allocation3], %s189
        %p191 = pneg %p42
        %p192 = pneg %p39
        %p193 = pneg %p63
        %p194 = pneg %p60
        %p195 = pneg %p84
        %p196 = pneg %p81
        %p197 = pneg %p110
        %p198 = pneg %p107
        %s199 = sand.u32 %s97, 1
        %s200 = scalar_lea.sflag [#allocation5], %s199
        %s201 = sand.u32 %s97, 1
        %s202 = smul.addr %s201, 16
        %s203 = scalar_lea.vmem [#allocation8], %s202
        %s204 = smul.u32 3, %s21
        %s205 = smul.u32 2, %s21
        %v206 = vld [vmem:[%s177] sm:$0xff]
        %v207 = vld [vmem:[%s177 + $0x8] sm:$0xff]
        %v208 = vld [vmem:[%s177 + $0x10] sm:$0xff]
        %v209 = vld [vmem:[%s2] sm:$0xf]
        %v210 = vld [vmem:[#allocation6] sm:$0xff]
        %v211 = vld [vmem:[#allocation6 + $0x8] sm:$0xff]
        %v212 = vld [vmem:[#allocation6 + $0x10] sm:$0xff]
        %v213 = vld [vmem:[#allocation6 + $0x18] sm:$0xff]
        %v214 = vld [vmem:[#allocation6 + $0x20] sm:$0xff]
        %v215 = vld [vmem:[#allocation6 + $0x28] sm:$0xff]
        %v216 = vld [vmem:[#allocation6 + $0x30] sm:$0xff]
        %v217 = vld [vmem:[#allocation6 + $0x38] sm:$0xff]
        %v218 = vld [vmem:[#allocation6 + $0x40] sm:$0xff]
        %v219 = vld [vmem:[#allocation6 + $0x48] sm:$0xff]
        %v220 = vld [vmem:[#allocation6 + $0x50] sm:$0xff]
        %v221 = vld [vmem:[#allocation6 + $0x58] sm:$0xff]
        %v222 = vld [vmem:[#allocation6 + $0x60] sm:$0xff]
        %v223 = vld [vmem:[#allocation6 + $0x68] sm:$0xff]
        %v224 = vld [vmem:[#allocation6 + $0x70] sm:$0xff]
        %v225 = vld [vmem:[#allocation6 + $0x78] sm:$0xff]
        %v226 = vld [vmem:[#allocation6 + $0x80] sm:$0xff]
        %v227 = vld [vmem:[#allocation6 + $0x88] sm:$0xff]
        %v228 = vld [vmem:[#allocation6 + $0x90] sm:$0xff]
        %v229 = vld [vmem:[#allocation6 + $0x98] sm:$0xff]
        %v230 = vld [vmem:[#allocation6 + $0xa0] sm:$0xff]
        %v231 = vld [vmem:[#allocation6 + $0xa8] sm:$0xff]
        %v232 = vld [vmem:[#allocation6 + $0xb0] sm:$0xff]
        %v233 = vld [vmem:[#allocation6 + $0xb8] sm:$0xff]
        %v234 = vld [vmem:[#allocation6 + $0xc0] sm:$0xff]
        %v235 = vld [vmem:[#allocation6 + $0xc8] sm:$0xff]
        %v236 = vld [vmem:[#allocation6 + $0xd0] sm:$0xff]
        %v237 = vld [vmem:[#allocation6 + $0xd8] sm:$0xff]
        %v238 = vld [vmem:[#allocation6 + $0xe0] sm:$0xff]
        %v239 = vld [vmem:[#allocation6 + $0xe8] sm:$0xff]
        %v240 = vld [vmem:[#allocation6 + $0xf0] sm:$0xff]
        %v241 = vld [vmem:[#allocation6 + $0xf8] sm:$0xff]
        %v242 = vld [vmem:[#allocation6 + $0x100] sm:$0xff]
        %v243 = vld [vmem:[#allocation6 + $0x108] sm:$0xff]
        %v244 = vld [vmem:[#allocation6 + $0x110] sm:$0xff]
        %v245 = vld [vmem:[#allocation6 + $0x118] sm:$0xff]
        %v246 = vld [vmem:[#allocation6 + $0x120] sm:$0xff]
        %v247 = vld [vmem:[#allocation6 + $0x128] sm:$0xff]
        %v248 = vld [vmem:[#allocation6 + $0x130] sm:$0xff]
        %v249 = vld [vmem:[#allocation6 + $0x138] sm:$0xff]
        %v250 = vld [vmem:[#allocation6 + $0x140] sm:$0xff]
        %v251 = vld [vmem:[#allocation6 + $0x148] sm:$0xff]
        %v252 = vld [vmem:[#allocation6 + $0x150] sm:$0xff]
        %v253 = vld [vmem:[#allocation6 + $0x158] sm:$0xff]
        %v254 = vld [vmem:[#allocation6 + $0x160] sm:$0xff]
        %v255 = vld [vmem:[#allocation6 + $0x168] sm:$0xff]
        %v256 = vld [vmem:[#allocation6 + $0x170] sm:$0xff]
        %v257 = vld [vmem:[#allocation6 + $0x178] sm:$0xff]
        %258 = vmatprep.subr.mxu0 %v211
        %259 = vmatpush1.msra.mxu0 %v210
        %260 = vmatprep.subr.mxu0 %v214
        %261 = vmatpush1.msra.mxu0 %v213
        %262 = vmatprep.subr.mxu0 %v217
        %263 = vmatpush1.msra.mxu0 %v216
        %264 = vmatprep.subr.mxu0 %v220
        %265 = vmatpush1.msra.mxu0 %v219
        %266 = vmatprep.subr.mxu0 %v223
        %267 = vmatpush1.msra.mxu0 %v222
        %268 = vmatprep.subr.mxu0 %v226
        %269 = vmatpush1.msra.mxu0 %v225
        %270 = vmatprep.subr.mxu0 %v229
        %271 = vmatpush1.msra.mxu0 %v228
        %272 = vmatprep.subr.mxu0 %v232
        %273 = vmatpush1.msra.mxu0 %v231
        %274 = vmatprep.subr.mxu0 %v235
        %275 = vmatpush1.msra.mxu0 %v234
        %276 = vmatprep.subr.mxu0 %v238
        %277 = vmatpush1.msra.mxu0 %v237
        %278 = vmatprep.subr.mxu0 %v241
        %279 = vmatpush1.msra.mxu0 %v240
        %280 = vmatprep.subr.mxu0 %v244
        %281 = vmatpush1.msra.mxu0 %v243
        %282 = vmatprep.subr.mxu0 %v247
        %283 = vmatpush1.msra.mxu0 %v246
        %284 = vmatprep.subr.mxu0 %v250
        %285 = vmatpush1.msra.mxu0 %v249
        %286 = vmatprep.subr.mxu0 %v253
        %287 = vmatpush1.msra.mxu0 %v252
        %288 = vmatprep.subr.mxu0 %v256
        %289 = vmatpush1.msra.mxu0 %v255
        %290 = vmatprep.subr.mxu0 0.0
        %291 = vmatpush1.msra.mxu0 0.0
        %292 = vmatprep.subr.mxu0 0.0
        %293 = vmatpush1.msra.mxu0 0.0
        %294 = vmatprep.subr.mxu0 0.0
        %295 = vmatpush1.msra.mxu0 0.0
        %296 = vmatprep.subr.mxu0 0.0
        %297 = vmatpush1.msra.mxu0 0.0
        %298 = vmatprep.subr.mxu0 0.0
        %299 = vmatpush1.msra.mxu0 0.0
        %300 = vmatprep.subr.mxu0 0.0
        %301 = vmatpush1.msra.mxu0 0.0
        %302 = vmatprep.subr.mxu0 0.0
        %303 = vmatpush1.msra.mxu0 0.0
        %304 = vmatprep.subr.mxu0 0.0
        %305 = vmatpush1.msra.mxu0 0.0
        %306 = vmatprep.subr.mxu0 0.0
        %307 = vmatpush1.msra.mxu0 0.0
        %308 = vmatprep.subr.mxu0 0.0
        %309 = vmatpush1.msra.mxu0 0.0
        %310 = vmatprep.subr.mxu0 0.0
        %311 = vmatpush1.msra.mxu0 0.0
        %312 = vmatprep.subr.mxu0 0.0
        %313 = vmatpush1.msra.mxu0 0.0
        %314 = vmatprep.subr.mxu0 0.0
        %315 = vmatpush1.msra.mxu0 0.0
        %316 = vmatprep.subr.mxu0 0.0
        %317 = vmatpush1.msra.mxu0 0.0
        %318 = vmatprep.subr.mxu0 0.0
        %319 = vmatpush1.msra.mxu0 0.0
        %320 = vmatprep.subr.mxu0 0.0
        %321 = vmatpush1.msra.mxu0 0.0
        %322 = vmatprep.mubr.f32.mxu0 0.0
        %323 = vmatmul.mubr.f32.gmra.mrb[0].mxu0 %v206
        %v324 = vpop.f32.mrb[0].mxu0
        %v325 = vadd.f32 0.0, %v324
        %v326 = vpop.f32.mrb[0].mxu0
        %v327 = vadd.f32 0.0, %v326
        %328 = vmatprep.mubr.f32.mxu0 0.0
        %329 = vmatmul.mubr.f32.gmra.mrb[0].mxu0 %v207
        %v330 = vpop.f32.mrb[0].mxu0
        %v331 = vadd.f32 0.0, %v330
        %v332 = vpop.f32.mrb[0].mxu0
        %v333 = vadd.f32 0.0, %v332
        %334 = vmatprep.mubr.f32.mxu0 0.0
        %335 = vmatmul.mubr.f32.gmra.mrb[0].mxu0 %v208
        %v336 = vpop.f32.mrb[0].mxu0
        %v337 = vpop.f32.mrb[0].mxu0
        %v338 = vadd.f32 0.0, %v337
        %339 = vdwg.mxu0
        %340 = vmatprep.subr.mxu0 0.0
        %341 = vmatpush1.msra.mxu0 %v212
        %342 = vmatprep.subr.mxu0 0.0
        %343 = vmatpush1.msra.mxu0 %v215
        %344 = vmatprep.subr.mxu0 0.0
        %345 = vmatpush1.msra.mxu0 %v218
        %346 = vmatprep.subr.mxu0 0.0
        %347 = vmatpush1.msra.mxu0 %v221
        %348 = vmatprep.subr.mxu0 0.0
        %349 = vmatpush1.msra.mxu0 %v224
        %350 = vmatprep.subr.mxu0 0.0
        %351 = vmatpush1.msra.mxu0 %v227
        %352 = vmatprep.subr.mxu0 0.0
        %353 = vmatpush1.msra.mxu0 %v230
        %354 = vmatprep.subr.mxu0 0.0
        %355 = vmatpush1.msra.mxu0 %v233
        %356 = vmatprep.subr.mxu0 0.0
        %357 = vmatpush1.msra.mxu0 %v236
        %358 = vmatprep.subr.mxu0 0.0
        %359 = vmatpush1.msra.mxu0 %v239
        %360 = vmatprep.subr.mxu0 0.0
        %361 = vmatpush1.msra.mxu0 %v242
        %362 = vmatprep.subr.mxu0 0.0
        %363 = vmatpush1.msra.mxu0 %v245
        %364 = vmatprep.subr.mxu0 0.0
        %365 = vmatpush1.msra.mxu0 %v248
        %366 = vmatprep.subr.mxu0 0.0
        %367 = vmatpush1.msra.mxu0 %v251
        %368 = vmatprep.subr.mxu0 0.0
        %369 = vmatpush1.msra.mxu0 %v254
        %370 = vmatprep.subr.mxu0 0.0
        %371 = vmatpush1.msra.mxu0 %v257
        %372 = vmatprep.subr.mxu0 0.0
        %373 = vmatpush1.msra.mxu0 0.0
        %374 = vmatprep.subr.mxu0 0.0
        %375 = vmatpush1.msra.mxu0 0.0
        %376 = vmatprep.subr.mxu0 0.0
        %377 = vmatpush1.msra.mxu0 0.0
        %378 = vmatprep.subr.mxu0 0.0
        %379 = vmatpush1.msra.mxu0 0.0
        %380 = vmatprep.subr.mxu0 0.0
        %381 = vmatpush1.msra.mxu0 0.0
        %382 = vmatprep.subr.mxu0 0.0
        %383 = vmatpush1.msra.mxu0 0.0
        %384 = vmatprep.subr.mxu0 0.0
        %385 = vmatpush1.msra.mxu0 0.0
        %386 = vmatprep.subr.mxu0 0.0
        %387 = vmatpush1.msra.mxu0 0.0
        %388 = vmatprep.subr.mxu0 0.0
        %389 = vmatpush1.msra.mxu0 0.0
        %390 = vmatprep.subr.mxu0 0.0
        %391 = vmatpush1.msra.mxu0 0.0
        %392 = vmatprep.subr.mxu0 0.0
        %393 = vmatpush1.msra.mxu0 0.0
        %394 = vmatprep.subr.mxu0 0.0
        %395 = vmatpush1.msra.mxu0 0.0
        %396 = vmatprep.subr.mxu0 0.0
        %397 = vmatpush1.msra.mxu0 0.0
        %398 = vmatprep.subr.mxu0 0.0
        %399 = vmatpush1.msra.mxu0 0.0
        %400 = vmatprep.subr.mxu0 0.0
        %401 = vmatpush1.msra.mxu0 0.0
        %402 = vmatprep.subr.mxu0 0.0
        %403 = vmatpush1.msra.mxu0 0.0
        %404 = vmatprep.mubr.f32.mxu0 0.0
        %405 = vmatmul.mubr.f32.gmra.mrb[0].mxu0 %v206
        %v406 = vpop.f32.mrb[0].mxu0
        %v407 = vadd.f32 0.0, %v406
        %v408 = vpop.f32.mrb[0].mxu0
        %409 = vmatprep.mubr.f32.mxu0 0.0
        %410 = vmatmul.mubr.f32.gmra.mrb[0].mxu0 %v207
        %v411 = vpop.f32.mrb[0].mxu0
        %v412 = vadd.f32 0.0, %v411
        %v413 = vpop.f32.mrb[0].mxu0
        %414 = vmatprep.mubr.f32.mxu0 0.0
        %415 = vmatmul.mubr.f32.gmra.mrb[0].mxu0 %v208
        %v416 = vpop.f32.mrb[0].mxu0
        %v417 = vadd.f32 0.0, %v416
        %v418 = vpop.f32.mrb[0].mxu0
        %419 = vdwg.mxu0
        %vm423 = vcmask 1046528
        %v424 = vrot.slane %v327, 1
        %v425 = vrot.slane %v333, 1
        %v426 = vsel %vm423, %v424, %v425
        %v427 = vrot.slane %v338, 1
        %v428 = vsel %vm423, %v425, %v427
        %v431 = vadd.f32 %v325, %v426
        %v432 = vadd.f32 %v331, %v428
        %vm436 = vcmask 1045504
        %v437 = vrot.slane %v407, 2
        %v438 = vrot.slane %v412, 2
        %v439 = vsel %vm436, %v437, %v438
        %v440 = vrot.slane %v417, 2
        %v441 = vsel %vm436, %v438, %v440
        %v444 = vadd.f32 %v431, %v439
        %v445 = vadd.f32 %v432, %v441
        %v446 = vlaneseq
        %v447 = vshrl.u32 %v446, 7
        %v448 = vsub.s32 0, %v447
        %v449 = vrot.slane %v209, %v448
        %v450 = vmul.f32 %v444, %v449
        %v451 = vmul.f32 %v445, %v449
        %v452 = vlaneseq
        %v453 = vshrl.u32 %v452, 7
        %v454 = vsub.s32 1, %v453
        %v455 = vrot.slane %v209, %v454
        %v456 = vadd.f32 %v450, %v455
        %v457 = vadd.f32 %v451, %v455
        %v458 = vmax.f32 %v456, 0.0
        %v459 = vmax.f32 %v457, 0.0
        %460 = vst [vmem:[#allocation2] sm:$0xff] 0.0
        %461 = vst [vmem:[#allocation2 + $0x8] sm:$0xff] 0.0
        %462 = vst [vmem:[#allocation2 + $0x10] sm:$0xff] 0.0
        %463 = vst [vmem:[#allocation2 + $0x1] sm:$0xff] %v458
        %464 = vst [vmem:[#allocation2 + $0x9] sm:$0xff] %v459
        %v465 = vld [vmem:[#allocation2] sm:$0xff]
        %v466 = vld [vmem:[#allocation2 + $0x8] sm:$0xff]
        %v467 = vld [vmem:[#allocation2 + $0x10] sm:$0xff]
        %s468 = scalar_lea.vmem [#allocation6], 384
        %v469 = vld [vmem:[%s468] sm:$0xff]
        %v470 = vld [vmem:[%s468 + $0x8] sm:$0xff]
        %v471 = vld [vmem:[%s468 + $0x10] sm:$0xff]
        %v472 = vld [vmem:[%s468 + $0x18] sm:$0xff]
        %v473 = vld [vmem:[%s468 + $0x20] sm:$0xff]
        %v474 = vld [vmem:[%s468 + $0x28] sm:$0xff]
        %v475 = vld [vmem:[%s468 + $0x30] sm:$0xff]
        %v476 = vld [vmem:[%s468 + $0x38] sm:$0xff]
        %v477 = vld [vmem:[%s468 + $0x40] sm:$0xff]
        %v478 = vld [vmem:[%s468 + $0x48] sm:$0xff]
        %v479 = vld [vmem:[%s468 + $0x50] sm:$0xff]
        %v480 = vld [vmem:[%s468 + $0x58] sm:$0xff]
        %v481 = vld [vmem:[%s468 + $0x60] sm:$0xff]
        %v482 = vld [vmem:[%s468 + $0x68] sm:$0xff]
        %v483 = vld [vmem:[%s468 + $0x70] sm:$0xff]
        %v484 = vld [vmem:[%s468 + $0x78] sm:$0xff]
        %v485 = vld [vmem:[%s468 + $0x80] sm:$0xff]
        %v486 = vld [vmem:[%s468 + $0x88] sm:$0xff]
        %v487 = vld [vmem:[%s468 + $0x90] sm:$0xff]
        %v488 = vld [vmem:[%s468 + $0x98] sm:$0xff]
        %v489 = vld [vmem:[%s468 + $0xa0] sm:$0xff]
        %v490 = vld [vmem:[%s468 + $0xa8] sm:$0xff]
        %v491 = vld [vmem:[%s468 + $0xb0] sm:$0xff]
        %v492 = vld [vmem:[%s468 + $0xb8] sm:$0xff]
        %v493 = vld [vmem:[%s468 + $0xc0] sm:$0xff]
        %v494 = vld [vmem:[%s468 + $0xc8] sm:$0xff]
        %v495 = vld [vmem:[%s468 + $0xd0] sm:$0xff]
        %v496 = vld [vmem:[%s468 + $0xd8] sm:$0xff]
        %v497 = vld [vmem:[%s468 + $0xe0] sm:$0xff]
        %v498 = vld [vmem:[%s468 + $0xe8] sm:$0xff]
        %v499 = vld [vmem:[%s468 + $0xf0] sm:$0xff]
        %v500 = vld [vmem:[%s468 + $0xf8] sm:$0xff]
        %v501 = vld [vmem:[%s468 + $0x100] sm:$0xff]
        %v502 = vld [vmem:[%s468 + $0x108] sm:$0xff]
        %v503 = vld [vmem:[%s468 + $0x110] sm:$0xff]
        %v504 = vld [vmem:[%s468 + $0x118] sm:$0xff]
        %v505 = vld [vmem:[%s468 + $0x120] sm:$0xff]
        %v506 = vld [vmem:[%s468 + $0x128] sm:$0xff]
        %v507 = vld [vmem:[%s468 + $0x130] sm:$0xff]
        %v508 = vld [vmem:[%s468 + $0x138] sm:$0xff]
        %v509 = vld [vmem:[%s468 + $0x140] sm:$0xff]
        %v510 = vld [vmem:[%s468 + $0x148] sm:$0xff]
        %v511 = vld [vmem:[%s468 + $0x150] sm:$0xff]
        %v512 = vld [vmem:[%s468 + $0x158] sm:$0xff]
        %v513 = vld [vmem:[%s468 + $0x160] sm:$0xff]
        %v514 = vld [vmem:[%s468 + $0x168] sm:$0xff]
        %v515 = vld [vmem:[%s468 + $0x170] sm:$0xff]
        %v516 = vld [vmem:[%s468 + $0x178] sm:$0xff]
        %517 = vmatprep.subr.mxu0 %v470
        %518 = vmatpush1.msra.mxu0 %v469
        %519 = vmatprep.subr.mxu0 %v473
        %520 = vmatpush1.msra.mxu0 %v472
        %521 = vmatprep.subr.mxu0 %v476
        %522 = vmatpush1.msra.mxu0 %v475
        %523 = vmatprep.subr.mxu0 %v479
        %524 = vmatpush1.msra.mxu0 %v478
        %525 = vmatprep.subr.mxu0 %v482
        %526 = vmatpush1.msra.mxu0 %v481
        %527 = vmatprep.subr.mxu0 %v485
        %528 = vmatpush1.msra.mxu0 %v484
        %529 = vmatprep.subr.mxu0 %v488
        %530 = vmatpush1.msra.mxu0 %v487
        %531 = vmatprep.subr.mxu0 %v491
        %532 = vmatpush1.msra.mxu0 %v490
        %533 = vmatprep.subr.mxu0 %v494
        %534 = vmatpush1.msra.mxu0 %v493
        %535 = vmatprep.subr.mxu0 %v497
        %536 = vmatpush1.msra.mxu0 %v496
        %537 = vmatprep.subr.mxu0 %v500
        %538 = vmatpush1.msra.mxu0 %v499
        %539 = vmatprep.subr.mxu0 %v503
        %540 = vmatpush1.msra.mxu0 %v502
        %541 = vmatprep.subr.mxu0 %v506
        %542 = vmatpush1.msra.mxu0 %v505
        %543 = vmatprep.subr.mxu0 %v509
        %544 = vmatpush1.msra.mxu0 %v508
        %545 = vmatprep.subr.mxu0 %v512
        %546 = vmatpush1.msra.mxu0 %v511
        %547 = vmatprep.subr.mxu0 %v515
        %548 = vmatpush1.msra.mxu0 %v514
        %549 = vmatprep.subr.mxu0 0.0
        %550 = vmatpush1.msra.mxu0 0.0
        %551 = vmatprep.subr.mxu0 0.0
        %552 = vmatpush1.msra.mxu0 0.0
        %553 = vmatprep.subr.mxu0 0.0
        %554 = vmatpush1.msra.mxu0 0.0
        %555 = vmatprep.subr.mxu0 0.0
        %556 = vmatpush1.msra.mxu0 0.0
        %557 = vmatprep.subr.mxu0 0.0
        %558 = vmatpush1.msra.mxu0 0.0
        %559 = vmatprep.subr.mxu0 0.0
        %560 = vmatpush1.msra.mxu0 0.0
        %561 = vmatprep.subr.mxu0 0.0
        %562 = vmatpush1.msra.mxu0 0.0
        %563 = vmatprep.subr.mxu0 0.0
        %564 = vmatpush1.msra.mxu0 0.0
        %565 = vmatprep.subr.mxu0 0.0
        %566 = vmatpush1.msra.mxu0 0.0
        %567 = vmatprep.subr.mxu0 0.0
        %568 = vmatpush1.msra.mxu0 0.0
        %569 = vmatprep.subr.mxu0 0.0
        %570 = vmatpush1.msra.mxu0 0.0
        %571 = vmatprep.subr.mxu0 0.0
        %572 = vmatpush1.msra.mxu0 0.0
        %573 = vmatprep.subr.mxu0 0.0
        %574 = vmatpush1.msra.mxu0 0.0
        %575 = vmatprep.subr.mxu0 0.0
        %576 = vmatpush1.msra.mxu0 0.0
        %577 = vmatprep.subr.mxu0 0.0
        %578 = vmatpush1.msra.mxu0 0.0
        %579 = vmatprep.subr.mxu0 0.0
        %580 = vmatpush1.msra.mxu0 0.0
        %581 = vmatprep.mubr.f32.mxu0 0.0
        %582 = vmatmul.mubr.f32.gmra.mrb[0].mxu0 %v465
        %v583 = vpop.f32.mrb[0].mxu0
        %v584 = vadd.f32 0.0, %v583
        %v585 = vpop.f32.mrb[0].mxu0
        %v586 = vadd.f32 0.0, %v585
        %587 = vmatprep.mubr.f32.mxu0 0.0
        %588 = vmatmul.mubr.f32.gmra.mrb[0].mxu0 %v466
        %v589 = vpop.f32.mrb[0].mxu0
        %v590 = vadd.f32 0.0, %v589
        %v591 = vpop.f32.mrb[0].mxu0
        %v592 = vadd.f32 0.0, %v591
        %593 = vmatprep.mubr.f32.mxu0 0.0
        %594 = vmatmul.mubr.f32.gmra.mrb[0].mxu0 %v467
        %v595 = vpop.f32.mrb[0].mxu0
        %v596 = vpop.f32.mrb[0].mxu0
        %v597 = vadd.f32 0.0, %v596
        %598 = vdwg.mxu0
        %599 = vmatprep.subr.mxu0 0.0
        %600 = vmatpush1.msra.mxu0 %v471
        %601 = vmatprep.subr.mxu0 0.0
        %602 = vmatpush1.msra.mxu0 %v474
        %603 = vmatprep.subr.mxu0 0.0
        %604 = vmatpush1.msra.mxu0 %v477
        %605 = vmatprep.subr.mxu0 0.0
        %606 = vmatpush1.msra.mxu0 %v480
        %607 = vmatprep.subr.mxu0 0.0
        %608 = vmatpush1.msra.mxu0 %v483
        %609 = vmatprep.subr.mxu0 0.0
        %610 = vmatpush1.msra.mxu0 %v486
        %611 = vmatprep.subr.mxu0 0.0
        %612 = vmatpush1.msra.mxu0 %v489
        %613 = vmatprep.subr.mxu0 0.0
        %614 = vmatpush1.msra.mxu0 %v492
        %615 = vmatprep.subr.mxu0 0.0
        %616 = vmatpush1.msra.mxu0 %v495
        %617 = vmatprep.subr.mxu0 0.0
        %618 = vmatpush1.msra.mxu0 %v498
        %619 = vmatprep.subr.mxu0 0.0
        %620 = vmatpush1.msra.mxu0 %v501
        %621 = vmatprep.subr.mxu0 0.0
        %622 = vmatpush1.msra.mxu0 %v504
        %623 = vmatprep.subr.mxu0 0.0
        %624 = vmatpush1.msra.mxu0 %v507
        %625 = vmatprep.subr.mxu0 0.0
        %626 = vmatpush1.msra.mxu0 %v510
        %627 = vmatprep.subr.mxu0 0.0
        %628 = vmatpush1.msra.mxu0 %v513
        %629 = vmatprep.subr.mxu0 0.0
        %630 = vmatpush1.msra.mxu0 %v516
        %631 = vmatprep.subr.mxu0 0.0
        %632 = vmatpush1.msra.mxu0 0.0
        %633 = vmatprep.subr.mxu0 0.0
        %634 = vmatpush1.msra.mxu0 0.0
        %635 = vmatprep.subr.mxu0 0.0
        %636 = vmatpush1.msra.mxu0 0.0
        %637 = vmatprep.subr.mxu0 0.0
        %638 = vmatpush1.msra.mxu0 0.0
        %639 = vmatprep.subr.mxu0 0.0
        %640 = vmatpush1.msra.mxu0 0.0
        %641 = vmatprep.subr.mxu0 0.0
        %642 = vmatpush1.msra.mxu0 0.0
        %643 = vmatprep.subr.mxu0 0.0
        %644 = vmatpush1.msra.mxu0 0.0
        %645 = vmatprep.subr.mxu0 0.0
        %646 = vmatpush1.msra.mxu0 0.0
        %647 = vmatprep.subr.mxu0 0.0
        %648 = vmatpush1.msra.mxu0 0.0
        %649 = vmatprep.subr.mxu0 0.0
        %650 = vmatpush1.msra.mxu0 0.0
        %651 = vmatprep.subr.mxu0 0.0
        %652 = vmatpush1.msra.mxu0 0.0
        %653 = vmatprep.subr.mxu0 0.0
        %654 = vmatpush1.msra.mxu0 0.0
        %655 = vmatprep.subr.mxu0 0.0
        %656 = vmatpush1.msra.mxu0 0.0
        %657 = vmatprep.subr.mxu0 0.0
        %658 = vmatpush1.msra.mxu0 0.0
        %659 = vmatprep.subr.mxu0 0.0
        %660 = vmatpush1.msra.mxu0 0.0
        %661 = vmatprep.subr.mxu0 0.0
        %662 = vmatpush1.msra.mxu0 0.0
        %663 = vmatprep.mubr.f32.mxu0 0.0
        %664 = vmatmul.mubr.f32.gmra.mrb[0].mxu0 %v465
        %v665 = vpop.f32.mrb[0].mxu0
        %v666 = vadd.f32 0.0, %v665
        %v667 = vpop.f32.mrb[0].mxu0
        %668 = vmatprep.mubr.f32.mxu0 0.0
        %669 = vmatmul.mubr.f32.gmra.mrb[0].mxu0 %v466
        %v670 = vpop.f32.mrb[0].mxu0
        %v671 = vadd.f32 0.0, %v670
        %v672 = vpop.f32.mrb[0].mxu0
        %673 = vmatprep.mubr.f32.mxu0 0.0
        %674 = vmatmul.mubr.f32.gmra.mrb[0].mxu0 %v467
        %v675 = vpop.f32.mrb[0].mxu0
        %v676 = vadd.f32 0.0, %v675
        %v677 = vpop.f32.mrb[0].mxu0
        %678 = vdwg.mxu0
        %v682 = vrot.slane %v586, 1
        %v683 = vrot.slane %v592, 1
        %v684 = vsel %vm423, %v682, %v683
        %v685 = vrot.slane %v597, 1
        %v686 = vsel %vm423, %v683, %v685
        %v689 = vadd.f32 %v584, %v684
        %v690 = vadd.f32 %v590, %v686
        %v694 = vrot.slane %v666, 2
        %v695 = vrot.slane %v671, 2
        %v696 = vsel %vm436, %v694, %v695
        %v697 = vrot.slane %v676, 2
        %v698 = vsel %vm436, %v695, %v697
        %v701 = vadd.f32 %v689, %v696
        %v702 = vadd.f32 %v690, %v698
        %v703 = vlaneseq
        %v704 = vshrl.u32 %v703, 7
        %v705 = vsub.s32 2, %v704
        %v706 = vrot.slane %v209, %v705
        %v707 = vmul.f32 %v701, %v706
        %v708 = vmul.f32 %v702, %v706
        %v709 = vlaneseq
        %v710 = vshrl.u32 %v709, 7
        %v711 = vsub.s32 3, %v710
        %v712 = vrot.slane %v209, %v711
        %v713 = vadd.f32 %v707, %v712
        %v714 = vadd.f32 %v708, %v712
        %v718 = vrot.slane %v206, 1
        %v719 = vrot.slane %v207, 1
        %v720 = vsel %vm423, %v718, %v719
        %v721 = vrot.slane %v208, 1
        %v722 = vsel %vm423, %v719, %v721
        %v725 = vadd.f32 %v713, %v720
        %v726 = vadd.f32 %v714, %v722
        %v727 = vmax.f32 %v725, 0.0
        %v728 = vmax.f32 %v726, 0.0
        %729 = vst [vmem:[%s203] sm:$0xff] %v727
        %730 = vst [vmem:[%s203 + $0x8] sm:$0xff] %v728
        %s731 = sand.u32 %s97, 1
        %s732 = scalar_lea.sflag [#allocation5], %s731
        %s733 = sand.u32 %s97, 1
        %s734 = smul.addr %s733, 16
        %s735 = scalar_lea.vmem [#allocation8], %s734
        // Predicated region
        $region41: #{tpu_custom_call.1} parent=31 // pred_check
          %p736 = pneg %p107
        $region42: #{tpu_custom_call.1} parent=31 // pred_check_branch
          %738 = sbr.rel (%p736) target = $region44
        $region43: #{tpu_custom_call.1} parent=31 // pred_region
          %s739 = smul.u32 2, %s21
          %s741 = ssub.s32 256, 256
          %742 = vsyncadd %s732, %s741
          %s743 = smul.addr %s739, 128
          %s744 = scalar_lea.hbm %s3, %s743
          %s745 = sshll.u32 %s735, 4
          %s746 = int_to_ptr.vmem [resolvable:$true] %s745
          %751 = dma.vmem_to_hbm [thread:$0]  %s746, 256, %s744, %s732, 128, 128, 8
        $region44: #{tpu_custom_call.1} parent=31 // pred_fallthru
          _
      $region32: #{tpu_custom_call.1} parent=5 // pred_fallthru
        _
      %p752 = scmp.le.s32.totalorder 2, %s16
      // Predicated region
      $region45: #{tpu_custom_call.1} parent=5 // pred_check
        %p753 = pneg %p752
      $region46: #{tpu_custom_call.1} parent=5 // pred_check_branch
        %755 = sbr.rel (%p753) target = $region48
      $region47: #{tpu_custom_call.1} parent=5 // pred_region
        %s756 = ssub.s32 %s16, 2
        // Predicated region
        $region49: #{tpu_custom_call.1} parent=47 // pred_check
          %p757 = pneg %p113
        $region50: #{tpu_custom_call.1} parent=47 // pred_check_branch
          %759 = sbr.rel (%p757) target = $region52
        $region51: #{tpu_custom_call.1} parent=47 // pred_region
          %s760 = sand.u32 %s98, 1
          %s761 = scalar_lea.sflag [#allocation5], %s760
          %s762 = sand.u32 %s98, 1
          %s763 = smul.addr %s762, 16
          %s764 = scalar_lea.vmem [#allocation8], %s763
          %765 = dma.done %s761, 256
        $region52: #{tpu_custom_call.1} parent=47 // pred_fallthru
          _
      $region48: #{tpu_custom_call.1} parent=5 // pred_fallthru
        _
    $region6: #{tpu_custom_call.1} parent=1 // loop_footer
      %s20 = sadd.s32 1, %s16
    $region7: #{tpu_custom_call.1} parent=1 // loop_footer_branch
      %15 = sbr.rel target = $region3
    $region8: #{tpu_custom_call.1} parent=1 // loop_exit
      _
    %766 = vsyncpa [#allocation4], 1
    %s767 = scalar_lea.sflag [#allocation4], 1
    %768 = vsyncpa %s767, 1
    %769 = vsyncpa [#allocation7], 1
    %770 = vsyncpa [#allocation5], 1
    %s771 = scalar_lea.sflag [#allocation5], 1
    %772 = vsyncpa %s771, 1

</llo_original>
